<compile_context>
chip_gen: v5e
topology: v5e:2x2
jax: 0.10.0
libtpu: 0.0.40
codegen_flags: <defaults>
</compile_context>

<pallas_src>
import math

import jax
import jax.numpy as jnp
from jax.experimental import pallas as pl
from jax.experimental.pallas import tpu as pltpu


def _scalar_kernel(x_ref, scale_ref, bias_ref, o_ref):
    # x_ref: (tile_rows, W); scale_ref/bias_ref: (1, W) -> broadcast over rows.
    # Parameters have a constant block index, so they stay resident in VMEM.
    o_ref[...] = x_ref[...] * scale_ref[...] + bias_ref[...]


def _pick_fold(n_rows, feat, max_width=512):
    """Smallest row-fold k making (k*feat) a multiple of 128, widened while it
    still divides n_rows and stays <= max_width lanes."""
    k = 128 // math.gcd(feat, 128)
    if n_rows % k != 0:
        return 1  # keep original width; still correct (masked stores)
    while (2 * k * feat) <= max_width and n_rows % (2 * k) == 0:
        k *= 2
    return k


def _pick_tile_rows(n_rows, width, itemsize, target_bytes=2 << 20):
    """Largest divisor of n_rows that is a multiple of 8, fits in target_bytes,
    and (when possible) leaves >= 2 grid steps. Falls back to the full extent."""
    if n_rows % 8 != 0:
        return n_rows  # full-extent block is always legal
    max_rows = max(8, target_bytes // max(1, width * itemsize))
    cap = min(n_rows, max_rows)
    if n_rows >= 16:
        cap = min(cap, n_rows // 2)  # keep >= 2 grid steps for v7x megacore
    best = None
    for cand in range(8, cap + 1, 8):
        if n_rows % cand == 0:
            best = cand
    return best if best is not None else n_rows


def scalar_forward(x, mean, std):
    """(x - mean) / std with mean/std broadcast over the last axis of x."""
    orig_shape = x.shape
    feat = orig_shape[-1]
    total_rows = x.size // feat

    # Precompute scale/bias on the tiny parameter vectors (exact reciprocal).
    mean_f32 = mean.astype(jnp.float32)
    std_f32 = std.astype(jnp.float32)
    scale_1d = (1.0 / std_f32).astype(x.dtype)
    bias_1d = (-(mean_f32 / std_f32)).astype(x.dtype)

    # Lane-dense folding: (rows, F) -> (rows/k, k*F) with k*F % 128 == 0.
    itemsize = jnp.dtype(x.dtype).itemsize
    k = _pick_fold(total_rows, feat)
    width = k * feat
    n_rows = total_rows // k

    x2d = x.reshape(n_rows, width)
    scale2d = jnp.tile(scale_1d, k).reshape(1, width)
    bias2d = jnp.tile(bias_1d, k).reshape(1, width)

    tile_rows = _pick_tile_rows(n_rows, width, itemsize)
    grid = (n_rows // tile_rows,)

    out = pl.pallas_call(
        _scalar_kernel,
        out_shape=jax.ShapeDtypeStruct((n_rows, width), x.dtype),
        grid_spec=pltpu.PrefetchScalarGridSpec(
            num_scalar_prefetch=0,
            grid=grid,
            in_specs=[
                pl.BlockSpec((tile_rows, width), lambda i: (i, 0)),
                pl.BlockSpec((1, width), lambda i: (0, 0)),
                pl.BlockSpec((1, width), lambda i: (0, 0)),
            ],
            out_specs=pl.BlockSpec((tile_rows, width), lambda i: (i, 0)),
        ),
        compiler_params=pltpu.CompilerParams(
            dimension_semantics=("parallel",)
        ),
    )(x2d, scale2d, bias2d)

    return out.reshape(orig_shape)


if __name__ == "__main__":
    # Small shapes consistent with the audio-tagging usage of Scalar:
    # input (batch, channels, time, mel_bins), parameters of length mel_bins.
    B, C, T, F = 2, 4, 16, 64

    key = jax.random.PRNGKey(0)
    kx, km, ks = jax.random.split(key, 3)

    x = jax.random.normal(kx, (B, C, T, F), dtype=jnp.float32)
    scalar_mean = jax.random.normal(km, (F,), dtype=jnp.float32)
    scalar_std = jax.random.uniform(ks, (F,), dtype=jnp.float32,
                                    minval=0.5, maxval=1.5)

    out = scalar_forward(x, scalar_mean, scalar_std)
    out = jax.block_until_ready(out)

    # Reference check against plain JAX broadcasting semantics.
    # Tolerance relaxed slightly: x*(1/std) + (-mean/std) differs from
    # (x - mean)/std by a couple of ULPs.
    ref = (x - scalar_mean) / scalar_std
    assert out.shape == x.shape
    assert jnp.allclose(out, ref, atol=1e-5, rtol=1e-5)

    print("KERNEL_OK")
</pallas_src>

<mosaic_0001>
module attributes {stable_mosaic.version = 11 : i64} {
  func.func @_scalar_kernel(%arg0: i32, %arg1: memref<8x512xf32, #tpu.memory_space<vmem>>, %arg2: memref<1x512xf32, #tpu.memory_space<vmem>>, %arg3: memref<1x512xf32, #tpu.memory_space<vmem>>, %arg4: memref<8x512xf32, #tpu.memory_space<vmem>>) attributes {dimension_semantics = [#tpu.dimension_semantics<parallel>], iteration_bounds = array<i64: 2>, scalar_prefetch = 0 : i64, scratch_operands = 0 : i64, tpu.core_type = #tpu.core_type<tc>, window_params = [{transform_indices = @transform_0, window_bounds = array<i64: 8, 512>}, {pipeline_mode = #tpu.pipeline_mode<synchronous>, transform_indices = @transform_1, window_bounds = array<i64: 1, 512>}, {pipeline_mode = #tpu.pipeline_mode<synchronous>, transform_indices = @transform_2, window_bounds = array<i64: 1, 512>}, {transform_indices = @transform_3, window_bounds = array<i64: 8, 512>}]} {
    %c0 = arith.constant 0 : index
    %c0_0 = arith.constant 0 : index
    %0 = vector.load %arg1[%c0, %c0_0] : memref<8x512xf32, #tpu.memory_space<vmem>>, vector<8x512xf32>
    %c0_1 = arith.constant 0 : index
    %c0_2 = arith.constant 0 : index
    %1 = vector.load %arg2[%c0_1, %c0_2] : memref<1x512xf32, #tpu.memory_space<vmem>>, vector<1x512xf32>
    %2 = vector.broadcast %1 : vector<1x512xf32> to vector<8x512xf32>
    %3 = arith.mulf %0, %2 : vector<8x512xf32>
    %c0_3 = arith.constant 0 : index
    %c0_4 = arith.constant 0 : index
    %4 = vector.load %arg3[%c0_3, %c0_4] : memref<1x512xf32, #tpu.memory_space<vmem>>, vector<1x512xf32>
    %5 = vector.broadcast %4 : vector<1x512xf32> to vector<8x512xf32>
    %6 = arith.addf %3, %5 : vector<8x512xf32>
    %c0_5 = arith.constant 0 : index
    %c0_6 = arith.constant 0 : index
    %7 = vector.load %arg4[%c0_5, %c0_6] : memref<8x512xf32, #tpu.memory_space<vmem>>, vector<8x512xf32>
    tpu.vector_store %arg4[%c0_5, %c0_6], %6 {strides = array<i32>} : memref<8x512xf32, #tpu.memory_space<vmem>>, vector<8x512xf32>,
    return
  }
  func.func @transform_0(%arg0: i32) -> (i32, i32) {
    %c0_i32 = arith.constant 0 : i32
    %c0_i32_0 = arith.constant 0 : i32
    return %arg0, %c0_i32 : i32, i32
  }
  func.func @transform_1(%arg0: i32) -> (i32, i32) {
    %c0_i32 = arith.constant 0 : i32
    %c0_i32_0 = arith.constant 0 : i32
    %c0_i32_1 = arith.constant 0 : i32
    return %c0_i32, %c0_i32_0 : i32, i32
  }
  func.func @transform_2(%arg0: i32) -> (i32, i32) {
    %c0_i32 = arith.constant 0 : i32
    %c0_i32_0 = arith.constant 0 : i32
    %c0_i32_1 = arith.constant 0 : i32
    return %c0_i32, %c0_i32_0 : i32, i32
  }
  func.func @transform_3(%arg0: i32) -> (i32, i32) {
    %c0_i32 = arith.constant 0 : i32
    %c0_i32_0 = arith.constant 0 : i32
    return %arg0, %c0_i32 : i32, i32
  }
}

</mosaic_0001>

<llo_original>
// kernel: tpu_custom_call.1
$region0: #{tpu_custom_call.1}
  #allocation0 [shape = 'u32[]', space=smem, size = 0x4, offset = 0x4, fixed_abs, tag = 'smem constant byte address 0x4 - core index']
  #allocation1 [shape = 'u32[72,128]{1,0:T(1,128)}', space=vmem, size = 0x9000, scoped, tag = 'internal scratch']
  %s0 = inlined_call_operand.hbm [shape: f32[16,512], index: 0, kind: input, shape index: {}]
  %s1 = inlined_call_operand.hbm [shape: f32[1,512], index: 1, kind: input, shape index: {}]
  %s2 = inlined_call_operand.hbm [shape: f32[1,512], index: 2, kind: input, shape index: {}]
  %s3 = inlined_call_operand.hbm [shape: f32[16,512], index: 3, kind: output, shape index: {}]
  %s4 = sld [smem:[#allocation0]]
  $region57: #{tpu_custom_call.1} parent=0
    _
  %s6 = ssub.s32 1, %s4
  %s7 = scalar_select 0, %s6, %s4
  $region1: #{tpu_custom_call.1} parent=0
    #allocation2 [shape = 'u8[32768]{0}', space=vmem, size = 0x8000, scoped, tag = 'input window, operand 0']
    #allocation3 [shape = 's32[2]{0}', space=sflag, size = 0x8, scoped, tag = 'scoped memory for tpu_custom_call.1']
    #allocation4 [shape = 's32[2]{0}', space=sflag, size = 0x8, scoped, tag = 'scoped memory for tpu_custom_call.1']
    #allocation5 [shape = 'u8[2048]{0}', space=vmem, size = 0x800, scoped, tag = 'input window, operand 1, single buffered']
    #allocation6 [shape = 's32[1]{0}', space=sflag, size = 0x4, scoped, tag = 'scoped memory for tpu_custom_call.1']
    #allocation7 [shape = 'u8[2048]{0}', space=vmem, size = 0x800, scoped, tag = 'input window, operand 2, single buffered']
    #allocation8 [shape = 'u8[32768]{0}', space=vmem, size = 0x8000, scoped, tag = 'output window, operand 0']
    %8 = vsyncpa [#allocation3], 0
    %s9 = scalar_lea.sflag [#allocation3], 1
    %10 = vsyncpa %s9, 0
    %11 = vsyncpa [#allocation6], 0
    %12 = vsyncpa [#allocation4], 0
    %s13 = scalar_lea.sflag [#allocation4], 1
    %14 = vsyncpa %s13, 0
    loop: start=0, step=1, limit=4
    $region2: #{tpu_custom_call.1} parent=1 // loop_pre_header
      _
    $region3: #{tpu_custom_call.1} parent=1 // loop_header
      %s16 = sphi 0, %s20
      %p17 = scmp.ge.s32.totalorder %s16, 4
      %s26 = sphi 0, %s28
      %s29 = sphi 0, %s26
      %s30 = sphi 0, %s29
      %s46 = sphi 0, %s30
      %s50 = sphi 0, %s50
      %s52 = sphi 0, %s50
      %s53 = sphi 0, %s52
      %s67 = sphi 0, %s53
      %s71 = sphi 0, %s71
      %s73 = sphi 0, %s71
      %s74 = sphi 0, %s73
      %s88 = sphi 0, %s74
      %s94 = sphi 0, %s96
      %s97 = sphi 0, %s94
      %s98 = sphi 0, %s97
      %s114 = sphi 0, %s98
    $region4: #{tpu_custom_call.1} parent=1 // loop_header_branch
      %19 = sbr.rel (%p17) target = $region8
    $region5: #{tpu_custom_call.1} parent=1 // loop_body
      %s21 = ssub.s32 %s16, 1
      %s22 = ssub.s32 %s16, 2
      %s23 = sadd.s32 %s16, 1
      %s24 = ssub.s32 %s16, %s23
      %p25 = scmp.eq.s32.totalorder %s24, 0
      %s27 = sadd.s32 %s26, 1
      %s28 = scalar_select %p25, %s26, %s27
      %p31 = pneg %p25
      %p32 = scmp.eq.s32.totalorder %s16, 1
      %p33 = por %p31, %p32
      %p34 = scmp.ne.s32.totalorder %s26, %s29
      %p35 = scmp.eq.s32.totalorder %s16, 0
      %p36 = por %p34, %p35
      %p37 = scmp.ne.s32.totalorder %s26, %s29
      %p38 = scmp.eq.s32.totalorder %s21, 1
      %p39 = por %p37, %p38
      %p40 = scmp.ne.s32.totalorder %s29, %s30
      %p41 = scmp.eq.s32.totalorder %s21, 0
      %p42 = por %p40, %p41
      %p43 = scmp.ne.s32.totalorder %s29, %s30
      %p44 = scmp.eq.s32.totalorder %s22, 1
      %p45 = por %p43, %p44
      %p47 = scmp.ne.s32.totalorder %s30, %s46
      %p48 = scmp.eq.s32.totalorder %s22, 0
      %p49 = por %p47, %p48
      %s51 = sadd.s32 %s50, 1
      %p54 = scmp.eq.s32.totalorder %s16, 1
      %p55 = scmp.ne.s32.totalorder %s50, %s52
      %p56 = scmp.eq.s32.totalorder %s16, 0
      %p57 = por %p55, %p56
      %p58 = scmp.ne.s32.totalorder %s50, %s52
      %p59 = scmp.eq.s32.totalorder %s21, 1
      %p60 = por %p58, %p59
      %p61 = scmp.ne.s32.totalorder %s52, %s53
      %p62 = scmp.eq.s32.totalorder %s21, 0
      %p63 = por %p61, %p62
      %p64 = scmp.ne.s32.totalorder %s52, %s53
      %p65 = scmp.eq.s32.totalorder %s22, 1
      %p66 = por %p64, %p65
      %p68 = scmp.ne.s32.totalorder %s53, %s67
      %p69 = scmp.eq.s32.totalorder %s22, 0
      %p70 = por %p68, %p69
      %s72 = sadd.s32 %s71, 1
      %p75 = scmp.eq.s32.totalorder %s16, 1
      %p76 = scmp.ne.s32.totalorder %s71, %s73
      %p77 = scmp.eq.s32.totalorder %s16, 0
      %p78 = por %p76, %p77
      %p79 = scmp.ne.s32.totalorder %s71, %s73
      %p80 = scmp.eq.s32.totalorder %s21, 1
      %p81 = por %p79, %p80
      %p82 = scmp.ne.s32.totalorder %s73, %s74
      %p83 = scmp.eq.s32.totalorder %s21, 0
      %p84 = por %p82, %p83
      %p85 = scmp.ne.s32.totalorder %s73, %s74
      %p86 = scmp.eq.s32.totalorder %s22, 1
      %p87 = por %p85, %p86
      %p89 = scmp.ne.s32.totalorder %s74, %s88
      %p90 = scmp.eq.s32.totalorder %s22, 0
      %p91 = por %p89, %p90
      %s92 = ssub.s32 %s16, %s23
      %p93 = scmp.eq.s32.totalorder %s92, 0
      %s95 = sadd.s32 %s94, 1
      %s96 = scalar_select %p93, %s94, %s95
      %p99 = pneg %p93
      %p100 = scmp.eq.s32.totalorder %s16, 1
      %p101 = por %p99, %p100
      %p102 = scmp.ne.s32.totalorder %s94, %s97
      %p103 = scmp.eq.s32.totalorder %s16, 0
      %p104 = por %p102, %p103
      %p105 = scmp.ne.s32.totalorder %s94, %s97
      %p106 = scmp.eq.s32.totalorder %s21, 1
      %p107 = por %p105, %p106
      %p108 = scmp.ne.s32.totalorder %s97, %s98
      %p109 = scmp.eq.s32.totalorder %s21, 0
      %p110 = por %p108, %p109
      %p111 = scmp.ne.s32.totalorder %s97, %s98
      %p112 = scmp.eq.s32.totalorder %s22, 1
      %p113 = por %p111, %p112
      %p115 = scmp.ne.s32.totalorder %s98, %s114
      %p116 = scmp.eq.s32.totalorder %s22, 0
      %p117 = por %p115, %p116
      %p118 = scmp.le.s32.totalorder 1, %s16
      %p119 = scmp.lt.s32.totalorder %s16, 3
      %p120 = pnand %p118, %p119
      %p121 = pneg %p120
      // Predicated region
      $region9: #{tpu_custom_call.1} parent=5 // pred_check
        _
      $region10: #{tpu_custom_call.1} parent=5 // pred_check_branch
        %123 = sbr.rel (%p120) target = $region12
      $region11: #{tpu_custom_call.1} parent=5 // pred_region
        %s124 = ssub.s32 %s16, 1
        // Predicated region
        $region13: #{tpu_custom_call.1} parent=11 // pred_check
          %p125 = pneg %p63
        $region14: #{tpu_custom_call.1} parent=11 // pred_check_branch
          %127 = sbr.rel (%p125) target = $region16
        $region15: #{tpu_custom_call.1} parent=11 // pred_region
          %129 = vsyncadd [#allocation6], 0
          %s131 = sshll.u32 %s1, 4
          %s132 = int_to_ptr.hbm [resolvable:$true] %s131
          %s133 = sshll.u32 [#allocation5], 4
          %s134 = int_to_ptr.vmem [resolvable:$true] %s133
          %136 = dma.hbm_to_vmem [thread:$0]  %s132, 64, %s134, [#allocation6]
        $region16: #{tpu_custom_call.1} parent=11 // pred_fallthru
          _
        // Predicated region
        $region17: #{tpu_custom_call.1} parent=11 // pred_check
          %p137 = pneg %p84
        $region18: #{tpu_custom_call.1} parent=11 // pred_check_branch
          %139 = sbr.rel (%p137) target = $region20
        $region19: #{tpu_custom_call.1} parent=11 // pred_region
          %141 = vsyncadd [#allocation6], 0
          %s143 = sshll.u32 %s2, 4
          %s144 = int_to_ptr.hbm [resolvable:$true] %s143
          %s145 = sshll.u32 [#allocation7], 4
          %s146 = int_to_ptr.vmem [resolvable:$true] %s145
          %148 = dma.hbm_to_vmem [thread:$0]  %s144, 64, %s146, [#allocation6]
        $region20: #{tpu_custom_call.1} parent=11 // pred_fallthru
          _
      $region12: #{tpu_custom_call.1} parent=5 // pred_fallthru
        _
      %p149 = scmp.lt.s32.totalorder %s16, 2
      // Predicated region
      $region21: #{tpu_custom_call.1} parent=5 // pred_check
        %p150 = pneg %p149
      $region22: #{tpu_custom_call.1} parent=5 // pred_check_branch
        %152 = sbr.rel (%p150) target = $region24
      $region23: #{tpu_custom_call.1} parent=5 // pred_region
        // Predicated region
        $region25: #{tpu_custom_call.1} parent=23 // pred_check
          %p153 = pneg %p36
        $region26: #{tpu_custom_call.1} parent=23 // pred_check_branch
          %155 = sbr.rel (%p153) target = $region28
        $region27: #{tpu_custom_call.1} parent=23 // pred_region
          %s156 = sand.u32 %s26, 1
          %s157 = scalar_lea.sflag [#allocation3], %s156
          %s158 = sand.u32 %s26, 1
          %s159 = smul.addr %s158, 32
          %s160 = scalar_lea.vmem [#allocation2], %s159
          %162 = vsyncadd %s157, 0
          %s163 = smul.addr %s16, 4
          %s164 = smul.addr %s163, 8
          %s165 = scalar_lea.hbm %s0, %s164
          %s167 = sshll.u32 %s165, 4
          %s168 = int_to_ptr.hbm [resolvable:$true] %s167
          %s169 = sshll.u32 %s160, 4
          %s170 = int_to_ptr.vmem [resolvable:$true] %s169
          %172 = dma.hbm_to_vmem [thread:$0]  %s168, 512, %s170, %s157
        $region28: #{tpu_custom_call.1} parent=23 // pred_fallthru
          _
      $region24: #{tpu_custom_call.1} parent=5 // pred_fallthru
        _
      %p173 = scmp.le.s32.totalorder 1, %s16
      %p174 = scmp.lt.s32.totalorder %s16, 3
      %p175 = pnand %p173, %p174
      %p176 = pneg %p175
      // Predicated region
      $region29: #{tpu_custom_call.1} parent=5 // pred_check
        _
      $region30: #{tpu_custom_call.1} parent=5 // pred_check_branch
        %178 = sbr.rel (%p175) target = $region32
      $region31: #{tpu_custom_call.1} parent=5 // pred_region
        %s179 = ssub.s32 %s16, 1
        %s180 = sand.u32 %s29, 1
        %s181 = scalar_lea.sflag [#allocation3], %s180
        %s182 = sand.u32 %s29, 1
        %s183 = smul.addr %s182, 32
        %s184 = scalar_lea.vmem [#allocation2], %s183
        // Predicated region
        $region33: #{tpu_custom_call.1} parent=31 // pred_check
          %p185 = pneg %p42
        $region34: #{tpu_custom_call.1} parent=31 // pred_check_branch
          %187 = sbr.rel (%p185) target = $region36
        $region35: #{tpu_custom_call.1} parent=31 // pred_region
          %189 = dma.done %s181, 512
        $region36: #{tpu_custom_call.1} parent=31 // pred_fallthru
          _
        // Predicated region
        $region37: #{tpu_custom_call.1} parent=31 // pred_check
          %p190 = pneg %p63
        $region38: #{tpu_custom_call.1} parent=31 // pred_check_branch
          %192 = sbr.rel (%p190) target = $region40
        $region39: #{tpu_custom_call.1} parent=31 // pred_region
          %194 = dma.done [#allocation6], 64
        $region40: #{tpu_custom_call.1} parent=31 // pred_fallthru
          _
        // Predicated region
        $region41: #{tpu_custom_call.1} parent=31 // pred_check
          %p195 = pneg %p84
        $region42: #{tpu_custom_call.1} parent=31 // pred_check_branch
          %197 = sbr.rel (%p195) target = $region44
        $region43: #{tpu_custom_call.1} parent=31 // pred_region
          %199 = dma.done [#allocation6], 64
        $region44: #{tpu_custom_call.1} parent=31 // pred_fallthru
          _
        %s200 = sand.u32 %s29, 1
        %s201 = scalar_lea.sflag [#allocation3], %s200
        %s202 = sand.u32 %s29, 1
        %s203 = smul.addr %s202, 32
        %s204 = scalar_lea.vmem [#allocation2], %s203
        %p205 = pneg %p42
        %p206 = pneg %p39
        %p207 = pneg %p63
        %p208 = pneg %p60
        %p209 = pneg %p84
        %p210 = pneg %p81
        %p211 = pneg %p110
        %p212 = pneg %p107
        %s213 = sand.u32 %s97, 1
        %s214 = scalar_lea.sflag [#allocation4], %s213
        %s215 = sand.u32 %s97, 1
        %s216 = smul.addr %s215, 32
        %s217 = scalar_lea.vmem [#allocation8], %s216
        %v218 = vld [vmem:[%s184] sm:$0xff]
        %v219 = vld [vmem:[%s184 + $0x8] sm:$0xff]
        %v220 = vld [vmem:[%s184 + $0x10] sm:$0xff]
        %v221 = vld [vmem:[%s184 + $0x18] sm:$0xff]
        %v222 = vld [vmem:[#allocation5] sm:$0xf]
        %v224 = vperm.slane %v222, 0
        %v225 = vperm.slane %v222, 1
        %v226 = vperm.slane %v222, 2
        %v227 = vperm.slane %v222, 3
        %v232 = vmul.f32 %v218, %v224
        %v233 = vmul.f32 %v219, %v225
        %v234 = vmul.f32 %v220, %v226
        %v235 = vmul.f32 %v221, %v227
        %v236 = vld [vmem:[#allocation7] sm:$0xf]
        %v238 = vperm.slane %v236, 0
        %v239 = vperm.slane %v236, 1
        %v240 = vperm.slane %v236, 2
        %v241 = vperm.slane %v236, 3
        %v246 = vadd.f32 %v232, %v238
        %v247 = vadd.f32 %v233, %v239
        %v248 = vadd.f32 %v234, %v240
        %v249 = vadd.f32 %v235, %v241
        %250 = vst [vmem:[%s217] sm:$0xff] %v246
        %251 = vst [vmem:[%s217 + $0x8] sm:$0xff] %v247
        %252 = vst [vmem:[%s217 + $0x10] sm:$0xff] %v248
        %253 = vst [vmem:[%s217 + $0x18] sm:$0xff] %v249
        %s254 = sand.u32 %s97, 1
        %s255 = scalar_lea.sflag [#allocation4], %s254
        %s256 = sand.u32 %s97, 1
        %s257 = smul.addr %s256, 32
        %s258 = scalar_lea.vmem [#allocation8], %s257
        // Predicated region
        $region45: #{tpu_custom_call.1} parent=31 // pred_check
          %p259 = pneg %p107
        $region46: #{tpu_custom_call.1} parent=31 // pred_check_branch
          %261 = sbr.rel (%p259) target = $region48
        $region47: #{tpu_custom_call.1} parent=31 // pred_region
          %263 = vsyncadd %s255, 0
          %s264 = smul.addr %s21, 4
          %s265 = smul.addr %s264, 8
          %s266 = scalar_lea.hbm %s3, %s265
          %s268 = sshll.u32 %s258, 4
          %s269 = int_to_ptr.vmem [resolvable:$true] %s268
          %s270 = sshll.u32 %s266, 4
          %s271 = int_to_ptr.hbm [resolvable:$true] %s270
          %273 = dma.vmem_to_hbm [thread:$0]  %s269, 512, %s271, %s255
        $region48: #{tpu_custom_call.1} parent=31 // pred_fallthru
          _
      $region32: #{tpu_custom_call.1} parent=5 // pred_fallthru
        _
      %p274 = scmp.le.s32.totalorder 2, %s16
      // Predicated region
      $region49: #{tpu_custom_call.1} parent=5 // pred_check
        %p275 = pneg %p274
      $region50: #{tpu_custom_call.1} parent=5 // pred_check_branch
        %277 = sbr.rel (%p275) target = $region52
      $region51: #{tpu_custom_call.1} parent=5 // pred_region
        %s278 = ssub.s32 %s16, 2
        // Predicated region
        $region53: #{tpu_custom_call.1} parent=51 // pred_check
          %p279 = pneg %p113
        $region54: #{tpu_custom_call.1} parent=51 // pred_check_branch
          %281 = sbr.rel (%p279) target = $region56
        $region55: #{tpu_custom_call.1} parent=51 // pred_region
          %s282 = sand.u32 %s98, 1
          %s283 = scalar_lea.sflag [#allocation4], %s282
          %s284 = sand.u32 %s98, 1
          %s285 = smul.addr %s284, 32
          %s286 = scalar_lea.vmem [#allocation8], %s285
          %288 = dma.done %s283, 512
        $region56: #{tpu_custom_call.1} parent=51 // pred_fallthru
          _
      $region52: #{tpu_custom_call.1} parent=5 // pred_fallthru
        _
    $region6: #{tpu_custom_call.1} parent=1 // loop_footer
      %s20 = sadd.s32 1, %s16
    $region7: #{tpu_custom_call.1} parent=1 // loop_footer_branch
      %15 = sbr.rel target = $region3
    $region8: #{tpu_custom_call.1} parent=1 // loop_exit
      _
    %289 = vsyncpa [#allocation3], 1
    %s290 = scalar_lea.sflag [#allocation3], 1
    %291 = vsyncpa %s290, 1
    %292 = vsyncpa [#allocation6], 1
    %293 = vsyncpa [#allocation4], 1
    %s294 = scalar_lea.sflag [#allocation4], 1
    %295 = vsyncpa %s294, 1

</llo_original>
